<compile_context>
chip_gen: v7x
topology: tpu7x:2x2x1
jax: 0.10.0
libtpu: 0.0.40
codegen_flags: <defaults>
</compile_context>

<pallas_src>
import functools

import jax
import jax.numpy as jnp
from jax.experimental import pallas as pl
from jax.experimental.pallas import tpu as pltpu

# torch: target = torch.empty(3, dtype=torch.long).random_(5)  -> class ids in [0, 5)
NUM_CLASS_BINS = 5


def _ce_tile_kernel(logits_ref, coef_ref, out_ref, *, total_rows):
    """One row tile: partial sum of  sum_C( coef[c] * log_softmax(x)[n, c] )."""
    i = pl.program_id(0)

    x = logits_ref[...].astype(jnp.float32)        # (TILE_N, C); cast after load
    coef = coef_ref[...]                           # (1, C) = -target * class_weights[target]
    tile_n = x.shape[0]

    # Numerically-stable logsumexp along the class (lane) axis.
    m = jnp.max(x, axis=1, keepdims=True)                                  # (TILE_N, 1)
    lse = jnp.log(jnp.sum(jnp.exp(x - m), axis=1, keepdims=True)) + m      # (TILE_N, 1)

    # sum_C coef[c] * (x - lse)  without materializing log-softmax.
    coef_total = jnp.sum(coef, axis=1, keepdims=True)                      # (1, 1)
    row_sum = jnp.sum(x * coef, axis=1, keepdims=True) - lse * coef_total  # (TILE_N, 1)

    # Mask rows past the end of the batch (partial last tile reads padding).
    row_ids = jax.lax.broadcasted_iota(jnp.int32, (tile_n, 1), 0) + i * tile_n
    row_sum = jnp.where(row_ids < total_rows, row_sum, 0.0)

    out_ref[...] = jnp.reshape(jnp.sum(row_sum), (1, 1, 1))


def _pick_tile_n(n, c, itemsize):
    # Largest row tile that keeps a double-buffered logits block well under the
    # per-generation scoped-VMEM budget (v7x has only 64 MiB physical VMEM).
    per_row_bytes = max(c, 128) * itemsize          # lane dim pads to 128
    tile = (4 * 1024 * 1024) // per_row_bytes       # ~4 MiB per buffer
    tile = max(8, min(1024, (tile // 8) * 8))
    if n <= tile:
        return n                                    # full dim is always a legal block
    return tile


def custom_cross_entropy_loss(logits, target, num_class_bins=NUM_CLASS_BINS):
    """logits: (N, C) float32/bf16, target: (C,) int class ids in [0, num_class_bins)."""
    n, c = logits.shape
    assert target.shape == (c,), "module's broadcasting requires len(target) == C"

    # --- hoisted, O(C), done once: coef[c] = -target[c] / bincount(target)[target[c]] ---
    tgt_i32 = target.astype(jnp.int32)
    class_ids = jnp.arange(num_class_bins, dtype=jnp.int32)
    counts = jnp.sum((tgt_i32[None, :] == class_ids[:, None]).astype(jnp.float32), axis=1)
    w_at_t = 1.0 / counts[tgt_i32]                                  # present classes => count >= 1
    coef = (-tgt_i32.astype(jnp.float32) * w_at_t).reshape(1, c)

    itemsize = jnp.dtype(logits.dtype).itemsize
    tile_n = _pick_tile_n(n, c, itemsize)
    num_tiles = pl.cdiv(n, tile_n)

    kernel = functools.partial(_ce_tile_kernel, total_rows=n)
    partials = pl.pallas_call(
        kernel,
        out_shape=jax.ShapeDtypeStruct((num_tiles, 1, 1), jnp.float32),
        grid=(num_tiles,),
        in_specs=[
            pl.BlockSpec((tile_n, c), lambda i: (i, 0)),
            pl.BlockSpec((1, c), lambda i: (0, 0)),
        ],
        out_specs=pl.BlockSpec((1, 1, 1), lambda i: (i, 0, 0)),
        compiler_params=pltpu.CompilerParams(
            dimension_semantics=("parallel",),
            vmem_limit_bytes=32 * 1024 * 1024,
        ),
        cost_estimate=pl.CostEstimate(
            flops=int(6 * n * c),
            transcendentals=int(n * c + n),
            bytes_accessed=int(n * c * itemsize + 4 * c + 4 * num_tiles),
        ),
    )(logits, coef)

    # mean_N( sum_C(weighted) ) == total sum / N
    return jnp.sum(partials) / n


if __name__ == "__main__":
    key = jax.random.PRNGKey(0)
    k_logits, k_tgt = jax.random.split(key)

    N, C = 6, 8  # original module's broadcasting requires len(target) == C
    logits = jax.random.normal(k_logits, (N, C), dtype=jnp.float32)
    target = jax.random.randint(k_tgt, (C,), 0, NUM_CLASS_BINS, dtype=jnp.int32)

    loss = custom_cross_entropy_loss(logits, target)
    jax.block_until_ready(loss)

    # Pure-JAX reference mirroring the torch forward exactly.
    logsm_ref = jax.nn.log_softmax(logits, axis=1)
    counts_ref = jnp.bincount(target, length=NUM_CLASS_BINS).astype(jnp.float32)
    w_ref = 1.0 / counts_ref[target]
    ref = jnp.mean(
        jnp.sum(-target.astype(jnp.float32) * logsm_ref * w_ref[None, :], axis=1)
    )
    assert jnp.allclose(loss, ref, rtol=1e-5, atol=1e-5), (loss, ref)

    # Also exercise the tiled path (multiple row tiles + masked partial last tile).
    N2 = 1037
    logits2 = jax.random.normal(jax.random.PRNGKey(1), (N2, C), dtype=jnp.float32)
    loss2 = custom_cross_entropy_loss(logits2, target)
    jax.block_until_ready(loss2)
    logsm2 = jax.nn.log_softmax(logits2, axis=1)
    ref2 = jnp.mean(
        jnp.sum(-target.astype(jnp.float32) * logsm2 * w_ref[None, :], axis=1)
    )
    assert jnp.allclose(loss2, ref2, rtol=1e-5, atol=1e-5), (loss2, ref2)

    print("KERNEL_OK")
</pallas_src>

<mosaic_0001>
module attributes {stable_mosaic.version = 11 : i64} {
  func.func @_ce_tile_kernel(%arg0: i32, %arg1: memref<6x8xf32, #tpu.memory_space<vmem>>, %arg2: memref<1x8xf32, #tpu.memory_space<vmem>>, %arg3: memref<1x1x1xf32, #tpu.memory_space<vmem>>) attributes {dimension_semantics = [#tpu.dimension_semantics<parallel>], iteration_bounds = array<i64: 1>, scalar_prefetch = 0 : i64, scratch_operands = 0 : i64, tpu.core_type = #tpu.core_type<tc>, window_params = [{transform_indices = @transform_0, window_bounds = array<i64: 6, 8>}, {pipeline_mode = #tpu.pipeline_mode<synchronous>, transform_indices = @transform_1, window_bounds = array<i64: 1, 8>}, {transform_indices = @transform_2, window_bounds = array<i64: 1, 1, 1>}]} {
    %c0 = arith.constant 0 : index
    %c0_0 = arith.constant 0 : index
    %0 = vector.load %arg1[%c0, %c0_0] : memref<6x8xf32, #tpu.memory_space<vmem>>, vector<6x8xf32>
    %c0_1 = arith.constant 0 : index
    %c0_2 = arith.constant 0 : index
    %1 = vector.load %arg2[%c0_1, %c0_2] : memref<1x8xf32, #tpu.memory_space<vmem>>, vector<1x8xf32>
    %cst = arith.constant dense<0xFF800000> : vector<6xf32>
    %2 = vector.multi_reduction <maximumf>, %0, %cst [1] : vector<6x8xf32> to vector<6xf32>
    %3 = vector.shape_cast %2 : vector<6xf32> to vector<6x1xf32>
    %4 = vector.broadcast %3 : vector<6x1xf32> to vector<6x8xf32>
    %5 = arith.subf %0, %4 : vector<6x8xf32>
    %6 = math.exp %5 : vector<6x8xf32>
    %cst_3 = arith.constant dense<0.000000e+00> : vector<6xf32>
    %7 = vector.multi_reduction <add>, %6, %cst_3 [1] : vector<6x8xf32> to vector<6xf32>
    %8 = vector.shape_cast %7 : vector<6xf32> to vector<6x1xf32>
    %9 = math.log %8 : vector<6x1xf32>
    %10 = arith.addf %9, %3 : vector<6x1xf32>
    %cst_4 = arith.constant dense<0.000000e+00> : vector<1xf32>
    %11 = vector.multi_reduction <add>, %1, %cst_4 [1] : vector<1x8xf32> to vector<1xf32>
    %12 = vector.shape_cast %11 : vector<1xf32> to vector<1x1xf32>
    %13 = vector.broadcast %1 : vector<1x8xf32> to vector<6x8xf32>
    %14 = arith.mulf %0, %13 : vector<6x8xf32>
    %cst_5 = arith.constant dense<0.000000e+00> : vector<6xf32>
    %15 = vector.multi_reduction <add>, %14, %cst_5 [1] : vector<6x8xf32> to vector<6xf32>
    %16 = vector.shape_cast %15 : vector<6xf32> to vector<6x1xf32>
    %17 = vector.broadcast %12 : vector<1x1xf32> to vector<6x1xf32>
    %18 = arith.mulf %10, %17 : vector<6x1xf32>
    %19 = arith.subf %16, %18 : vector<6x1xf32>
    %20 = tpu.iota {dimensions = array<i32: 0>} : vector<6x1xi32>
    %c6_i32 = arith.constant 6 : i32
    %21 = arith.muli %arg0, %c6_i32 : i32
    %22 = vector.broadcast %21 : i32 to vector<6x1xi32>
    %23 = arith.addi %20, %22 : vector<6x1xi32>
    %c6_i32_6 = arith.constant 6 : i32
    %24 = vector.broadcast %c6_i32_6 : i32 to vector<6x1xi32>
    %25 = arith.cmpi slt, %23, %24 : vector<6x1xi32>
    %cst_7 = arith.constant 0.000000e+00 : f32
    %26 = vector.broadcast %cst_7 : f32 to vector<6x1xf32>
    %27 = arith.select %25, %19, %26 : vector<6x1xi1>, vector<6x1xf32>
    %28 = vector.shape_cast %27 : vector<6x1xf32> to vector<1x6x1xf32>
    %cst_8 = arith.constant dense<0.000000e+00> : vector<1xf32>
    %29 = vector.multi_reduction <add>, %28, %cst_8 [1, 2] : vector<1x6x1xf32> to vector<1xf32>
    %30 = vector.shape_cast %29 : vector<1xf32> to vector<1x1x1xf32>
    %31 = vector.extract %30[0, 0, 0] : f32 from vector<1x1x1xf32>
    %32 = vector.broadcast %31 : f32 to vector<1x1x1xf32>
    %c0_9 = arith.constant 0 : index
    %c0_10 = arith.constant 0 : index
    %c0_11 = arith.constant 0 : index
    %33 = vector.load %arg3[%c0_9, %c0_10, %c0_11] : memref<1x1x1xf32, #tpu.memory_space<vmem>>, vector<1x1x1xf32>
    tpu.vector_store %arg3[%c0_9, %c0_10, %c0_11], %32 {strides = array<i32>} : memref<1x1x1xf32, #tpu.memory_space<vmem>>, vector<1x1x1xf32>,
    return
  }
  func.func @transform_0(%arg0: i32) -> (i32, i32) {
    %c0_i32 = arith.constant 0 : i32
    %c0_i32_0 = arith.constant 0 : i32
    return %arg0, %c0_i32 : i32, i32
  }
  func.func @transform_1(%arg0: i32) -> (i32, i32) {
    %c0_i32 = arith.constant 0 : i32
    %c0_i32_0 = arith.constant 0 : i32
    %c0_i32_1 = arith.constant 0 : i32
    return %c0_i32, %c0_i32_0 : i32, i32
  }
  func.func @transform_2(%arg0: i32) -> (i32, i32, i32) {
    %c0_i32 = arith.constant 0 : i32
    %c0_i32_0 = arith.constant 0 : i32
    %c0_i32_1 = arith.constant 0 : i32
    return %arg0, %c0_i32, %c0_i32_0 : i32, i32, i32
  }
}

</mosaic_0001>

<llo_original>
// kernel: tpu_custom_call.1
$region0: #{tpu_custom_call.1}
  #allocation0 [shape = 'u32[]', space=smem, size = 0x4, offset = 0x4, fixed_abs, tag = 'smem constant byte address 0x4 - core index']
  #allocation1 [shape = 'u32[144,128]{1,0:T(1,128)}', space=vmem, size = 0x12000, scoped, tag = 'internal scratch']
  %s0 = inlined_call_operand.hbm [shape: f32[6,8], index: 0, kind: input, shape index: {}]
  %s1 = inlined_call_operand.vmem [shape: f32[1,8], index: 1, kind: input, shape index: {}]
  %s2 = inlined_call_operand.hbm [shape: f32[1,1,1], index: 2, kind: output, shape index: {}]
  %s3 = sld [smem:[#allocation0]]
  $region22: #{tpu_custom_call.1} parent=0
    _
  %s5 = ssub.s32 1, %s3
  %s6 = scalar_select 0, %s5, %s3
  $region1: #{tpu_custom_call.1} parent=0
    #allocation2 [shape = 'u8[4096]{0}', space=vmem, size = 0x1000, scoped, tag = 'input window, operand 0, single buffered']
    #allocation3 [shape = 's32[1]{0}', space=sflag, size = 0x4, scoped, tag = 'scoped memory for tpu_custom_call.1']
    #allocation4 [shape = 's32[1]{0}', space=sflag, size = 0x4, scoped, tag = 'scoped memory for tpu_custom_call.1']
    #allocation5 [shape = 'u8[512]{0}', space=vmem, size = 0x400, scoped, tag = 'output window, operand 0, single buffered']
    %7 = vsyncpa [#allocation3], 0
    %8 = vsyncpa [#allocation4], 0
    // Predicated region
    $region2: #{tpu_custom_call.1} parent=1 // pred_check
      _
    $region3: #{tpu_custom_call.1} parent=1 // pred_check_branch
      %10 = sbr.rel (0) target = $region5
    $region4: #{tpu_custom_call.1} parent=1 // pred_region
      %s12 = ssub.s32 128, 128
      %13 = vsyncadd [#allocation3], %s12
      %s15 = sshll.u32 [#allocation2], 4
      %s16 = int_to_ptr.vmem [resolvable:$true] %s15
      %18 = dma.hbm_to_vmem [thread:$0]  %s0, 128, %s16, [#allocation3]
    $region5: #{tpu_custom_call.1} parent=1 // pred_fallthru
      _
    // Predicated region
    $region6: #{tpu_custom_call.1} parent=1 // pred_check
      _
    $region7: #{tpu_custom_call.1} parent=1 // pred_check_branch
      %20 = sbr.rel (0) target = $region9
    $region8: #{tpu_custom_call.1} parent=1 // pred_region
      _
    $region9: #{tpu_custom_call.1} parent=1 // pred_fallthru
      _
    // Predicated region
    $region10: #{tpu_custom_call.1} parent=1 // pred_check
      _
    $region11: #{tpu_custom_call.1} parent=1 // pred_check_branch
      %22 = sbr.rel (0) target = $region13
    $region12: #{tpu_custom_call.1} parent=1 // pred_region
      %23 = dma.done [#allocation3], 128
    $region13: #{tpu_custom_call.1} parent=1 // pred_fallthru
      _
    %v24 = vld [vmem:[#allocation2] sm:$0x3f]
    %v25 = vld [vmem:[%s1] sm:$0x1]
    %vm26 = vcmask 62464
    %v27 = vsel %vm26, %v24, -inf
    %28 = vmax.xlane.f32.xlu0 %v27
    %v29 = vpop.xlane.xlu0 %28
    %v30 = vsub.f32 %v24, %v29
    %v31 = vmul.f32 %v30, 1.442695
    %v32 = vpow.pop %v31
    %v33 = vsel %vm26, %v32, 0.0
    %34 = vadd.xlane.f32.xlu0 %v33
    %v35 = vpop.xlane.xlu0 %34
    %v36 = vlog2.pop %v35
    %v37 = vmul.f32 %v36, 0.6931472
    %v38 = vadd.f32 %v37, %v29
    %vm39 = vcmask 57344
    %v40 = vsel %vm39, %v25, 0.0
    %41 = vadd.xlane.f32.xlu0 %v40
    %v42 = vpop.xlane.xlu0 %41
    %v44 = vlaneseq
    %v45 = vshrl.u32 %v44, 7
    %v46 = vsub.s32 0, %v45
    %v47 = vrot.slane %v25, %v46
    %v49 = vmul.f32 %v24, %v47
    %v50 = vsel %vm26, %v49, 0.0
    %51 = vadd.xlane.f32.xlu0 %v50
    %v52 = vpop.xlane.xlu0 %51
    %v53 = vlaneseq
    %v54 = vshrl.u32 %v53, 7
    %v55 = vsub.s32 0, %v54
    %v56 = vrot.slane %v42, %v55
    %v57 = vmul.f32 %v38, %v56
    %v58 = vsub.f32 %v52, %v57
    %v59 = vlaneseq
    %v60 = vshrl.u32 %v59, 7
    %s61 = smul.u32 0, 6
    %v62 = vstv %s61
    %v63 = vadd.s32 %v60, %v62
    %vm64 = vcmp.lt.s32.totalorder %v63, 6
    %v65 = vsel %vm64, %v58, 0.0
    %vm66 = vcmask 5120
    %v67 = vsel %vm66, %v65, 0.0
    %68 = vadd.xlane.f32.xlu0 %v67
    %v69 = vpop.xlane.xlu0 %68
    %v70 = vrot.slane %v69, 4
    %v71 = vadd.f32 %v69, %v70
    %v72 = vrot.slane %v71, 2
    %v73 = vadd.f32 %v71, %v72
    %v74 = vrot.slane %v73, 1
    %v75 = vadd.f32 %v73, %v74
    %s76 = vtos %v75
    %v77 = vstv %s76
    %vm78 = vcmask 0
    %79 = vst.msk [vmem:[#allocation5] sm:$0x1] %vm78, %v77
    // Predicated region
    $region14: #{tpu_custom_call.1} parent=1 // pred_check
      _
    $region15: #{tpu_custom_call.1} parent=1 // pred_check_branch
      %81 = sbr.rel (0) target = $region17
    $region16: #{tpu_custom_call.1} parent=1 // pred_region
      %s83 = ssub.s32 16, 16
      %84 = vsyncadd [#allocation4], %s83
      %s86 = sshll.u32 [#allocation5], 4
      %s87 = int_to_ptr.vmem [resolvable:$true] %s86
      %89 = dma.vmem_to_hbm [thread:$0]  %s87, 16, %s2, [#allocation4]
    $region17: #{tpu_custom_call.1} parent=1 // pred_fallthru
      _
    // Predicated region
    $region18: #{tpu_custom_call.1} parent=1 // pred_check
      _
    $region19: #{tpu_custom_call.1} parent=1 // pred_check_branch
      %91 = sbr.rel (0) target = $region21
    $region20: #{tpu_custom_call.1} parent=1 // pred_region
      %92 = dma.done [#allocation4], 16
    $region21: #{tpu_custom_call.1} parent=1 // pred_fallthru
      _
    %93 = vsyncpa [#allocation3], 1
    %94 = vsyncpa [#allocation4], 1

</llo_original>
